<compile_context>
chip_gen: v5e
topology: v5e:2x2
jax: 0.10.0
libtpu: 0.0.40
codegen_flags: <defaults>
</compile_context>

<pallas_src>
import jax
import jax.numpy as jnp
from jax.experimental import pallas as pl
from jax.experimental.pallas import tpu as pltpu


def user_plugin_kernel(tokens_ref, lens_ref, user_ref, w_user_ref,
                       fused_ref, empty_proj_ref, bias_ref, out_ref):
    C, TB, L = tokens_ref.shape
    V = fused_ref.shape[1]

    # user-embedding slice of the Linear + bias (f32 accumulation on the MXU).
    acc = jnp.dot(user_ref[...], w_user_ref[...],
                  preferred_element_type=jnp.float32) + bias_ref[...]

    # Hoisted once for the whole kernel (JAX does not CSE broadcast_in_dim).
    iota_v = jax.lax.broadcasted_iota(jnp.int32, (TB, V), 1)

    for c in range(C):                        # static loop: col_count is small
        toks = tokens_ref[c]                  # (TB, L) int32
        n = lens_ref[:, c:c + 1]              # (TB, 1) int32

        # counts[b, v] = number of valid occurrences of token v in row b.
        # Validity mask fused into the compare -> one VPU op per slot.
        counts = jnp.zeros((TB, V), jnp.float32)
        for l in range(L):                    # static loop: max list length is small
            hit = (toks[:, l:l + 1] == iota_v) & (n > l)
            counts = counts + hit.astype(jnp.float32)

        # Fold the mean into counts before the matmul (reciprocal -> EUP slot).
        inv_n = pl.reciprocal(jnp.maximum(n.astype(jnp.float32), 1.0), approx=True)
        counts = counts * inv_n

        # mean_c @ W_c == counts_scaled @ (emb_c @ W_c), pre-fused in the wrapper.
        acc = acc + jnp.dot(counts, fused_ref[c],
                            preferred_element_type=jnp.float32)

        # Empty-embed contribution when a column has no tokens (counts row is all 0).
        acc = acc + (n == 0).astype(jnp.float32) * empty_proj_ref[c:c + 1, :]

    out_ref[...] = acc


def user_plugin_forward(tokens, lens, emb, empty, user, w, b, *, tb=None):
    """tokens: (C,B,L) int32, lens: (B,C) int32, emb: (C,V,H) f32, empty: (1,H) f32,
    user: (B,Hu) f32, w: (Hu+C*H, Hout) f32 (Linear weight pre-transposed), b: (1,Hout)."""
    C, B, L = tokens.shape
    V, H = emb.shape[1], emb.shape[2]
    Hu = user.shape[1]
    Hout = w.shape[1]
    Hpad = max(128, -(-Hout // 128) * 128)    # lane-dense output width

    if tb is None:
        tb = min(B, 256)                      # batch tile (pipelined / parallel axis)

    # Pad the Linear's output dim so kernel stores are unmasked (lane-dense).
    w_p = jnp.pad(w, ((0, 0), (0, Hpad - Hout)))
    b_p = jnp.pad(b, ((0, 0), (0, Hpad - Hout)))

    # Pre-fuse each column's embedding table with its slice of the Linear.
    w_user = w_p[:Hu]                                                           # (Hu, Hpad)
    fused = jnp.stack(
        [emb[c] @ w_p[Hu + c * H: Hu + (c + 1) * H] for c in range(C)])         # (C, V, Hpad)
    empty_proj = jnp.concatenate(
        [empty @ w_p[Hu + c * H: Hu + (c + 1) * H] for c in range(C)], axis=0)  # (C, Hpad)

    out_pad = pl.pallas_call(
        user_plugin_kernel,
        out_shape=jax.ShapeDtypeStruct((B, Hpad), jnp.float32),
        grid=(pl.cdiv(B, tb),),
        in_specs=[
            pl.BlockSpec((C, tb, L), lambda i: (0, i, 0)),     # tokens     (batch-tiled)
            pl.BlockSpec((tb, C), lambda i: (i, 0)),           # lens       (batch-tiled)
            pl.BlockSpec((tb, Hu), lambda i: (i, 0)),          # user       (batch-tiled)
            pl.BlockSpec((Hu, Hpad), lambda i: (0, 0)),        # w_user     (pinned)
            pl.BlockSpec((C, V, Hpad), lambda i: (0, 0, 0)),   # fused      (pinned)
            pl.BlockSpec((C, Hpad), lambda i: (0, 0)),         # empty_proj (pinned)
            pl.BlockSpec((1, Hpad), lambda i: (0, 0)),         # bias       (pinned)
        ],
        out_specs=pl.BlockSpec((tb, Hpad), lambda i: (i, 0)),
        compiler_params=pltpu.CompilerParams(
            dimension_semantics=("parallel",)),
    )(tokens, lens, user, w_user, fused, empty_proj, b_p)

    return out_pad[:, :Hout]


def reference(tokens, lens, emb, empty, user, w, b):
    """Pure-JAX reference with the original (unfused) parameters."""
    C, B, L = tokens.shape
    parts = []
    for c in range(C):
        e = emb[c][tokens[c]]                                    # (B, L, H)
        n = lens[:, c]                                           # (B,)
        mask = (jnp.arange(L)[None, :] < n[:, None]).astype(jnp.float32)
        summed = (e * mask[:, :, None]).sum(axis=1)
        mean = summed / jnp.maximum(n[:, None].astype(jnp.float32), 1.0)
        parts.append(jnp.where(n[:, None] > 0, mean, empty))
    plugged = jnp.concatenate(parts, axis=1)
    x = jnp.concatenate([user, plugged], axis=1)
    return x @ w + b


if __name__ == "__main__":
    # Small deterministic sizes consistent with the module.
    hidden = 32          # hidden_size == user_embed_size
    C = 3                # col_count (attribute columns, id_col excluded)
    V = 16               # padded common vocab size
    L = 4                # max list length per attribute
    num_users = 10
    B = 16               # batch of uids (tiled as 2 grid steps of 8 below)

    key = jax.random.PRNGKey(0)
    k_tok, k_len, k_emb, k_empty, k_user, k_w, k_b, k_uid = jax.random.split(key, 8)

    # Synthetic "depot": dense per-user attribute token / length tables.
    depot_tokens = jax.random.randint(k_tok, (num_users, C, L), 0, V, dtype=jnp.int32)
    depot_lens = jax.random.randint(k_len, (num_users, C), 0, L + 1, dtype=jnp.int32)  # 0 => empty

    # Parameters (deterministic, synthetic). empty is made nonzero so the
    # empty-embed branch is actually exercised by the check.
    emb = jax.random.normal(k_emb, (C, V, hidden), jnp.float32) * 0.02
    empty = jax.random.normal(k_empty, (1, hidden), jnp.float32) * 0.02
    w_t = jax.random.normal(k_w, (hidden + C * hidden, hidden), jnp.float32) * 0.05  # Linear W.T
    bias = jax.random.normal(k_b, (1, hidden), jnp.float32) * 0.01

    # Forward inputs.
    uids = jax.random.randint(k_uid, (B,), 0, num_users, dtype=jnp.int32)
    user_embedding = jax.random.normal(k_user, (B, hidden), jnp.float32)

    # Glue: per-uid gather of depot tables (the dict lookup in the original module).
    tokens = jnp.transpose(depot_tokens[uids], (1, 0, 2))   # (C, B, L)
    lens = depot_lens[uids]                                  # (B, C)

    out = user_plugin_forward(tokens, lens, emb, empty, user_embedding, w_t, bias, tb=8)
    out = jax.block_until_ready(out)

    ref = reference(tokens, lens, emb, empty, user_embedding, w_t, bias)
    assert out.shape == (B, hidden)
    # Slightly loosened vs pure-f32 because of pl.reciprocal(approx=True) and the
    # emb@W pre-fusion reassociation.
    assert jnp.allclose(out, ref, atol=5e-4, rtol=1e-3), "mismatch vs reference"

    print("KERNEL_OK")
</pallas_src>

<mosaic_0001>
module attributes {stable_mosaic.version = 11 : i64} {
  func.func @user_plugin_kernel(%arg0: i32, %arg1: memref<3x8x4xi32, #tpu.memory_space<vmem>>, %arg2: memref<8x3xi32, #tpu.memory_space<vmem>>, %arg3: memref<8x32xf32, #tpu.memory_space<vmem>>, %arg4: memref<32x128xf32, #tpu.memory_space<vmem>>, %arg5: memref<3x16x128xf32, #tpu.memory_space<vmem>>, %arg6: memref<3x128xf32, #tpu.memory_space<vmem>>, %arg7: memref<1x128xf32, #tpu.memory_space<vmem>>, %arg8: memref<8x128xf32, #tpu.memory_space<vmem>>) attributes {dimension_semantics = [#tpu.dimension_semantics<parallel>], iteration_bounds = array<i64: 2>, scalar_prefetch = 0 : i64, scratch_operands = 0 : i64, tpu.core_type = #tpu.core_type<tc>, window_params = [{transform_indices = @transform_0, window_bounds = array<i64: 3, 8, 4>}, {transform_indices = @transform_1, window_bounds = array<i64: 8, 3>}, {transform_indices = @transform_2, window_bounds = array<i64: 8, 32>}, {pipeline_mode = #tpu.pipeline_mode<synchronous>, transform_indices = @transform_3, window_bounds = array<i64: 32, 128>}, {pipeline_mode = #tpu.pipeline_mode<synchronous>, transform_indices = @transform_4, window_bounds = array<i64: 3, 16, 128>}, {pipeline_mode = #tpu.pipeline_mode<synchronous>, transform_indices = @transform_5, window_bounds = array<i64: 3, 128>}, {pipeline_mode = #tpu.pipeline_mode<synchronous>, transform_indices = @transform_6, window_bounds = array<i64: 1, 128>}, {transform_indices = @transform_7, window_bounds = array<i64: 8, 128>}]} {
    %c0 = arith.constant 0 : index
    %c0_0 = arith.constant 0 : index
    %0 = vector.load %arg3[%c0, %c0_0] : memref<8x32xf32, #tpu.memory_space<vmem>>, vector<8x32xf32>
    %c0_1 = arith.constant 0 : index
    %c0_2 = arith.constant 0 : index
    %1 = vector.load %arg4[%c0_1, %c0_2] : memref<32x128xf32, #tpu.memory_space<vmem>>, vector<32x128xf32>
    %cst = arith.constant dense<0.000000e+00> : vector<8x128xf32>
    %2 = tpu.matmul %0, %1, %cst {dimension_numbers = #tpu.dot_dimension_numbers<[1], [0], [0], [1], [0, 0, 1, 1], [], []>} : vector<8x32xf32>, vector<32x128xf32>, vector<8x128xf32> -> vector<8x128xf32>
    %c0_3 = arith.constant 0 : index
    %c0_4 = arith.constant 0 : index
    %3 = vector.load %arg7[%c0_3, %c0_4] : memref<1x128xf32, #tpu.memory_space<vmem>>, vector<1x128xf32>
    %4 = vector.broadcast %3 : vector<1x128xf32> to vector<8x128xf32>
    %5 = arith.addf %2, %4 : vector<8x128xf32>
    %6 = tpu.iota {dimensions = array<i32: 1>} : vector<8x16xi32>
    %c0_5 = arith.constant 0 : index
    %c0_6 = arith.constant 0 : index
    %c0_7 = arith.constant 0 : index
    %7 = vector.load %arg1[%c0_5, %c0_6, %c0_7] : memref<3x8x4xi32, #tpu.memory_space<vmem>>, vector<1x8x4xi32>
    %8 = vector.shape_cast %7 : vector<1x8x4xi32> to vector<8x4xi32>
    %c0_8 = arith.constant 0 : index
    %c0_9 = arith.constant 0 : index
    %9 = vector.load %arg2[%c0_8, %c0_9] : memref<8x3xi32, #tpu.memory_space<vmem>>, vector<8x1xi32>
    %cst_10 = arith.constant 0.000000e+00 : f32
    %10 = vector.broadcast %cst_10 : f32 to vector<8x16xf32>
    %11 = vector.extract_strided_slice %8 {offsets = [0, 0], sizes = [8, 1], strides = [1, 1]} : vector<8x4xi32> to vector<8x1xi32>
    %12 = vector.broadcast %11 : vector<8x1xi32> to vector<8x16xi32>
    %13 = arith.cmpi eq, %12, %6 : vector<8x16xi32>
    %c0_i32 = arith.constant 0 : i32
    %14 = vector.broadcast %c0_i32 : i32 to vector<8x1xi32>
    %15 = arith.cmpi sgt, %9, %14 : vector<8x1xi32>
    %16 = vector.broadcast %15 : vector<8x1xi1> to vector<8x16xi1>
    %17 = arith.andi %13, %16 : vector<8x16xi1>
    %18 = arith.extui %17 : vector<8x16xi1> to vector<8x16xi32>
    %19 = arith.sitofp %18 : vector<8x16xi32> to vector<8x16xf32>
    %20 = arith.addf %10, %19 : vector<8x16xf32>
    %21 = vector.extract_strided_slice %8 {offsets = [0, 1], sizes = [8, 1], strides = [1, 1]} : vector<8x4xi32> to vector<8x1xi32>
    %22 = vector.broadcast %21 : vector<8x1xi32> to vector<8x16xi32>
    %23 = arith.cmpi eq, %22, %6 : vector<8x16xi32>
    %c1_i32 = arith.constant 1 : i32
    %24 = vector.broadcast %c1_i32 : i32 to vector<8x1xi32>
    %25 = arith.cmpi sgt, %9, %24 : vector<8x1xi32>
    %26 = vector.broadcast %25 : vector<8x1xi1> to vector<8x16xi1>
    %27 = arith.andi %23, %26 : vector<8x16xi1>
    %28 = arith.extui %27 : vector<8x16xi1> to vector<8x16xi32>
    %29 = arith.sitofp %28 : vector<8x16xi32> to vector<8x16xf32>
    %30 = arith.addf %20, %29 : vector<8x16xf32>
    %31 = vector.extract_strided_slice %8 {offsets = [0, 2], sizes = [8, 1], strides = [1, 1]} : vector<8x4xi32> to vector<8x1xi32>
    %32 = vector.broadcast %31 : vector<8x1xi32> to vector<8x16xi32>
    %33 = arith.cmpi eq, %32, %6 : vector<8x16xi32>
    %c2_i32 = arith.constant 2 : i32
    %34 = vector.broadcast %c2_i32 : i32 to vector<8x1xi32>
    %35 = arith.cmpi sgt, %9, %34 : vector<8x1xi32>
    %36 = vector.broadcast %35 : vector<8x1xi1> to vector<8x16xi1>
    %37 = arith.andi %33, %36 : vector<8x16xi1>
    %38 = arith.extui %37 : vector<8x16xi1> to vector<8x16xi32>
    %39 = arith.sitofp %38 : vector<8x16xi32> to vector<8x16xf32>
    %40 = arith.addf %30, %39 : vector<8x16xf32>
    %41 = vector.extract_strided_slice %8 {offsets = [0, 3], sizes = [8, 1], strides = [1, 1]} : vector<8x4xi32> to vector<8x1xi32>
    %42 = vector.broadcast %41 : vector<8x1xi32> to vector<8x16xi32>
    %43 = arith.cmpi eq, %42, %6 : vector<8x16xi32>
    %c3_i32 = arith.constant 3 : i32
    %44 = vector.broadcast %c3_i32 : i32 to vector<8x1xi32>
    %45 = arith.cmpi sgt, %9, %44 : vector<8x1xi32>
    %46 = vector.broadcast %45 : vector<8x1xi1> to vector<8x16xi1>
    %47 = arith.andi %43, %46 : vector<8x16xi1>
    %48 = arith.extui %47 : vector<8x16xi1> to vector<8x16xi32>
    %49 = arith.sitofp %48 : vector<8x16xi32> to vector<8x16xf32>
    %50 = arith.addf %40, %49 : vector<8x16xf32>
    %51 = arith.sitofp %9 : vector<8x1xi32> to vector<8x1xf32>
    %cst_11 = arith.constant 1.000000e+00 : f32
    %52 = vector.broadcast %cst_11 : f32 to vector<8x1xf32>
    %53 = arith.maximumf %51, %52 : vector<8x1xf32>
    %54 = tpu.reciprocal %53 {approx = true} : vector<8x1xf32> -> vector<8x1xf32>
    %55 = vector.broadcast %54 : vector<8x1xf32> to vector<8x16xf32>
    %56 = arith.mulf %50, %55 : vector<8x16xf32>
    %c0_12 = arith.constant 0 : index
    %c0_13 = arith.constant 0 : index
    %c0_14 = arith.constant 0 : index
    %57 = vector.load %arg5[%c0_12, %c0_13, %c0_14] : memref<3x16x128xf32, #tpu.memory_space<vmem>>, vector<1x16x128xf32>
    %58 = vector.shape_cast %57 : vector<1x16x128xf32> to vector<16x128xf32>
    %cst_15 = arith.constant dense<0.000000e+00> : vector<8x128xf32>
    %59 = tpu.matmul %56, %58, %cst_15 {dimension_numbers = #tpu.dot_dimension_numbers<[1], [0], [0], [1], [0, 0, 1, 1], [], []>} : vector<8x16xf32>, vector<16x128xf32>, vector<8x128xf32> -> vector<8x128xf32>
    %60 = arith.addf %5, %59 : vector<8x128xf32>
    %c0_i32_16 = arith.constant 0 : i32
    %61 = vector.broadcast %c0_i32_16 : i32 to vector<8x1xi32>
    %62 = arith.cmpi eq, %9, %61 : vector<8x1xi32>
    %63 = arith.extui %62 : vector<8x1xi1> to vector<8x1xi32>
    %64 = arith.sitofp %63 : vector<8x1xi32> to vector<8x1xf32>
    %c0_17 = arith.constant 0 : index
    %c0_18 = arith.constant 0 : index
    %65 = vector.load %arg6[%c0_17, %c0_18] : memref<3x128xf32, #tpu.memory_space<vmem>>, vector<1x128xf32>
    %66 = vector.broadcast %64 : vector<8x1xf32> to vector<8x128xf32>
    %67 = vector.broadcast %65 : vector<1x128xf32> to vector<8x128xf32>
    %68 = arith.mulf %66, %67 : vector<8x128xf32>
    %69 = arith.addf %60, %68 : vector<8x128xf32>
    %c1 = arith.constant 1 : index
    %c0_19 = arith.constant 0 : index
    %c0_20 = arith.constant 0 : index
    %70 = vector.load %arg1[%c1, %c0_19, %c0_20] : memref<3x8x4xi32, #tpu.memory_space<vmem>>, vector<1x8x4xi32>
    %71 = vector.shape_cast %70 : vector<1x8x4xi32> to vector<8x4xi32>
    %c0_21 = arith.constant 0 : index
    %c1_22 = arith.constant 1 : index
    %72 = vector.load %arg2[%c0_21, %c1_22] : memref<8x3xi32, #tpu.memory_space<vmem>>, vector<8x1xi32>
    %cst_23 = arith.constant 0.000000e+00 : f32
    %73 = vector.broadcast %cst_23 : f32 to vector<8x16xf32>
    %74 = vector.extract_strided_slice %71 {offsets = [0, 0], sizes = [8, 1], strides = [1, 1]} : vector<8x4xi32> to vector<8x1xi32>
    %75 = vector.broadcast %74 : vector<8x1xi32> to vector<8x16xi32>
    %76 = arith.cmpi eq, %75, %6 : vector<8x16xi32>
    %c0_i32_24 = arith.constant 0 : i32
    %77 = vector.broadcast %c0_i32_24 : i32 to vector<8x1xi32>
    %78 = arith.cmpi sgt, %72, %77 : vector<8x1xi32>
    %79 = vector.broadcast %78 : vector<8x1xi1> to vector<8x16xi1>
    %80 = arith.andi %76, %79 : vector<8x16xi1>
    %81 = arith.extui %80 : vector<8x16xi1> to vector<8x16xi32>
    %82 = arith.sitofp %81 : vector<8x16xi32> to vector<8x16xf32>
    %83 = arith.addf %73, %82 : vector<8x16xf32>
    %84 = vector.extract_strided_slice %71 {offsets = [0, 1], sizes = [8, 1], strides = [1, 1]} : vector<8x4xi32> to vector<8x1xi32>
    %85 = vector.broadcast %84 : vector<8x1xi32> to vector<8x16xi32>
    %86 = arith.cmpi eq, %85, %6 : vector<8x16xi32>
    %c1_i32_25 = arith.constant 1 : i32
    %87 = vector.broadcast %c1_i32_25 : i32 to vector<8x1xi32>
    %88 = arith.cmpi sgt, %72, %87 : vector<8x1xi32>
    %89 = vector.broadcast %88 : vector<8x1xi1> to vector<8x16xi1>
    %90 = arith.andi %86, %89 : vector<8x16xi1>
    %91 = arith.extui %90 : vector<8x16xi1> to vector<8x16xi32>
    %92 = arith.sitofp %91 : vector<8x16xi32> to vector<8x16xf32>
    %93 = arith.addf %83, %92 : vector<8x16xf32>
    %94 = vector.extract_strided_slice %71 {offsets = [0, 2], sizes = [8, 1], strides = [1, 1]} : vector<8x4xi32> to vector<8x1xi32>
    %95 = vector.broadcast %94 : vector<8x1xi32> to vector<8x16xi32>
    %96 = arith.cmpi eq, %95, %6 : vector<8x16xi32>
    %c2_i32_26 = arith.constant 2 : i32
    %97 = vector.broadcast %c2_i32_26 : i32 to vector<8x1xi32>
    %98 = arith.cmpi sgt, %72, %97 : vector<8x1xi32>
    %99 = vector.broadcast %98 : vector<8x1xi1> to vector<8x16xi1>
    %100 = arith.andi %96, %99 : vector<8x16xi1>
    %101 = arith.extui %100 : vector<8x16xi1> to vector<8x16xi32>
    %102 = arith.sitofp %101 : vector<8x16xi32> to vector<8x16xf32>
    %103 = arith.addf %93, %102 : vector<8x16xf32>
    %104 = vector.extract_strided_slice %71 {offsets = [0, 3], sizes = [8, 1], strides = [1, 1]} : vector<8x4xi32> to vector<8x1xi32>
    %105 = vector.broadcast %104 : vector<8x1xi32> to vector<8x16xi32>
    %106 = arith.cmpi eq, %105, %6 : vector<8x16xi32>
    %c3_i32_27 = arith.constant 3 : i32
    %107 = vector.broadcast %c3_i32_27 : i32 to vector<8x1xi32>
    %108 = arith.cmpi sgt, %72, %107 : vector<8x1xi32>
    %109 = vector.broadcast %108 : vector<8x1xi1> to vector<8x16xi1>
    %110 = arith.andi %106, %109 : vector<8x16xi1>
    %111 = arith.extui %110 : vector<8x16xi1> to vector<8x16xi32>
    %112 = arith.sitofp %111 : vector<8x16xi32> to vector<8x16xf32>
    %113 = arith.addf %103, %112 : vector<8x16xf32>
    %114 = arith.sitofp %72 : vector<8x1xi32> to vector<8x1xf32>
    %cst_28 = arith.constant 1.000000e+00 : f32
    %115 = vector.broadcast %cst_28 : f32 to vector<8x1xf32>
    %116 = arith.maximumf %114, %115 : vector<8x1xf32>
    %117 = tpu.reciprocal %116 {approx = true} : vector<8x1xf32> -> vector<8x1xf32>
    %118 = vector.broadcast %117 : vector<8x1xf32> to vector<8x16xf32>
    %119 = arith.mulf %113, %118 : vector<8x16xf32>
    %c1_29 = arith.constant 1 : index
    %c0_30 = arith.constant 0 : index
    %c0_31 = arith.constant 0 : index
    %120 = vector.load %arg5[%c1_29, %c0_30, %c0_31] : memref<3x16x128xf32, #tpu.memory_space<vmem>>, vector<1x16x128xf32>
    %121 = vector.shape_cast %120 : vector<1x16x128xf32> to vector<16x128xf32>
    %cst_32 = arith.constant dense<0.000000e+00> : vector<8x128xf32>
    %122 = tpu.matmul %119, %121, %cst_32 {dimension_numbers = #tpu.dot_dimension_numbers<[1], [0], [0], [1], [0, 0, 1, 1], [], []>} : vector<8x16xf32>, vector<16x128xf32>, vector<8x128xf32> -> vector<8x128xf32>
    %123 = arith.addf %69, %122 : vector<8x128xf32>
    %c0_i32_33 = arith.constant 0 : i32
    %124 = vector.broadcast %c0_i32_33 : i32 to vector<8x1xi32>
    %125 = arith.cmpi eq, %72, %124 : vector<8x1xi32>
    %126 = arith.extui %125 : vector<8x1xi1> to vector<8x1xi32>
    %127 = arith.sitofp %126 : vector<8x1xi32> to vector<8x1xf32>
    %c1_34 = arith.constant 1 : index
    %c0_35 = arith.constant 0 : index
    %128 = vector.load %arg6[%c1_34, %c0_35] : memref<3x128xf32, #tpu.memory_space<vmem>>, vector<1x128xf32>
    %129 = vector.broadcast %127 : vector<8x1xf32> to vector<8x128xf32>
    %130 = vector.broadcast %128 : vector<1x128xf32> to vector<8x128xf32>
    %131 = arith.mulf %129, %130 : vector<8x128xf32>
    %132 = arith.addf %123, %131 : vector<8x128xf32>
    %c2 = arith.constant 2 : index
    %c0_36 = arith.constant 0 : index
    %c0_37 = arith.constant 0 : index
    %133 = vector.load %arg1[%c2, %c0_36, %c0_37] : memref<3x8x4xi32, #tpu.memory_space<vmem>>, vector<1x8x4xi32>
    %134 = vector.shape_cast %133 : vector<1x8x4xi32> to vector<8x4xi32>
    %c0_38 = arith.constant 0 : index
    %c2_39 = arith.constant 2 : index
    %135 = vector.load %arg2[%c0_38, %c2_39] : memref<8x3xi32, #tpu.memory_space<vmem>>, vector<8x1xi32>
    %cst_40 = arith.constant 0.000000e+00 : f32
    %136 = vector.broadcast %cst_40 : f32 to vector<8x16xf32>
    %137 = vector.extract_strided_slice %134 {offsets = [0, 0], sizes = [8, 1], strides = [1, 1]} : vector<8x4xi32> to vector<8x1xi32>
    %138 = vector.broadcast %137 : vector<8x1xi32> to vector<8x16xi32>
    %139 = arith.cmpi eq, %138, %6 : vector<8x16xi32>
    %c0_i32_41 = arith.constant 0 : i32
    %140 = vector.broadcast %c0_i32_41 : i32 to vector<8x1xi32>
    %141 = arith.cmpi sgt, %135, %140 : vector<8x1xi32>
    %142 = vector.broadcast %141 : vector<8x1xi1> to vector<8x16xi1>
    %143 = arith.andi %139, %142 : vector<8x16xi1>
    %144 = arith.extui %143 : vector<8x16xi1> to vector<8x16xi32>
    %145 = arith.sitofp %144 : vector<8x16xi32> to vector<8x16xf32>
    %146 = arith.addf %136, %145 : vector<8x16xf32>
    %147 = vector.extract_strided_slice %134 {offsets = [0, 1], sizes = [8, 1], strides = [1, 1]} : vector<8x4xi32> to vector<8x1xi32>
    %148 = vector.broadcast %147 : vector<8x1xi32> to vector<8x16xi32>
    %149 = arith.cmpi eq, %148, %6 : vector<8x16xi32>
    %c1_i32_42 = arith.constant 1 : i32
    %150 = vector.broadcast %c1_i32_42 : i32 to vector<8x1xi32>
    %151 = arith.cmpi sgt, %135, %150 : vector<8x1xi32>
    %152 = vector.broadcast %151 : vector<8x1xi1> to vector<8x16xi1>
    %153 = arith.andi %149, %152 : vector<8x16xi1>
    %154 = arith.extui %153 : vector<8x16xi1> to vector<8x16xi32>
    %155 = arith.sitofp %154 : vector<8x16xi32> to vector<8x16xf32>
    %156 = arith.addf %146, %155 : vector<8x16xf32>
    %157 = vector.extract_strided_slice %134 {offsets = [0, 2], sizes = [8, 1], strides = [1, 1]} : vector<8x4xi32> to vector<8x1xi32>
    %158 = vector.broadcast %157 : vector<8x1xi32> to vector<8x16xi32>
    %159 = arith.cmpi eq, %158, %6 : vector<8x16xi32>
    %c2_i32_43 = arith.constant 2 : i32
    %160 = vector.broadcast %c2_i32_43 : i32 to vector<8x1xi32>
    %161 = arith.cmpi sgt, %135, %160 : vector<8x1xi32>
    %162 = vector.broadcast %161 : vector<8x1xi1> to vector<8x16xi1>
    %163 = arith.andi %159, %162 : vector<8x16xi1>
    %164 = arith.extui %163 : vector<8x16xi1> to vector<8x16xi32>
    %165 = arith.sitofp %164 : vector<8x16xi32> to vector<8x16xf32>
    %166 = arith.addf %156, %165 : vector<8x16xf32>
    %167 = vector.extract_strided_slice %134 {offsets = [0, 3], sizes = [8, 1], strides = [1, 1]} : vector<8x4xi32> to vector<8x1xi32>
    %168 = vector.broadcast %167 : vector<8x1xi32> to vector<8x16xi32>
    %169 = arith.cmpi eq, %168, %6 : vector<8x16xi32>
    %c3_i32_44 = arith.constant 3 : i32
    %170 = vector.broadcast %c3_i32_44 : i32 to vector<8x1xi32>
    %171 = arith.cmpi sgt, %135, %170 : vector<8x1xi32>
    %172 = vector.broadcast %171 : vector<8x1xi1> to vector<8x16xi1>
    %173 = arith.andi %169, %172 : vector<8x16xi1>
    %174 = arith.extui %173 : vector<8x16xi1> to vector<8x16xi32>
    %175 = arith.sitofp %174 : vector<8x16xi32> to vector<8x16xf32>
    %176 = arith.addf %166, %175 : vector<8x16xf32>
    %177 = arith.sitofp %135 : vector<8x1xi32> to vector<8x1xf32>
    %cst_45 = arith.constant 1.000000e+00 : f32
    %178 = vector.broadcast %cst_45 : f32 to vector<8x1xf32>
    %179 = arith.maximumf %177, %178 : vector<8x1xf32>
    %180 = tpu.reciprocal %179 {approx = true} : vector<8x1xf32> -> vector<8x1xf32>
    %181 = vector.broadcast %180 : vector<8x1xf32> to vector<8x16xf32>
    %182 = arith.mulf %176, %181 : vector<8x16xf32>
    %c2_46 = arith.constant 2 : index
    %c0_47 = arith.constant 0 : index
    %c0_48 = arith.constant 0 : index
    %183 = vector.load %arg5[%c2_46, %c0_47, %c0_48] : memref<3x16x128xf32, #tpu.memory_space<vmem>>, vector<1x16x128xf32>
    %184 = vector.shape_cast %183 : vector<1x16x128xf32> to vector<16x128xf32>
    %cst_49 = arith.constant dense<0.000000e+00> : vector<8x128xf32>
    %185 = tpu.matmul %182, %184, %cst_49 {dimension_numbers = #tpu.dot_dimension_numbers<[1], [0], [0], [1], [0, 0, 1, 1], [], []>} : vector<8x16xf32>, vector<16x128xf32>, vector<8x128xf32> -> vector<8x128xf32>
    %186 = arith.addf %132, %185 : vector<8x128xf32>
    %c0_i32_50 = arith.constant 0 : i32
    %187 = vector.broadcast %c0_i32_50 : i32 to vector<8x1xi32>
    %188 = arith.cmpi eq, %135, %187 : vector<8x1xi32>
    %189 = arith.extui %188 : vector<8x1xi1> to vector<8x1xi32>
    %190 = arith.sitofp %189 : vector<8x1xi32> to vector<8x1xf32>
    %c2_51 = arith.constant 2 : index
    %c0_52 = arith.constant 0 : index
    %191 = vector.load %arg6[%c2_51, %c0_52] : memref<3x128xf32, #tpu.memory_space<vmem>>, vector<1x128xf32>
    %192 = vector.broadcast %190 : vector<8x1xf32> to vector<8x128xf32>
    %193 = vector.broadcast %191 : vector<1x128xf32> to vector<8x128xf32>
    %194 = arith.mulf %192, %193 : vector<8x128xf32>
    %195 = arith.addf %186, %194 : vector<8x128xf32>
    %c0_53 = arith.constant 0 : index
    %c0_54 = arith.constant 0 : index
    %196 = vector.load %arg8[%c0_53, %c0_54] : memref<8x128xf32, #tpu.memory_space<vmem>>, vector<8x128xf32>
    tpu.vector_store %arg8[%c0_53, %c0_54], %195 {strides = array<i32>} : memref<8x128xf32, #tpu.memory_space<vmem>>, vector<8x128xf32>,
    return
  }
  func.func @transform_0(%arg0: i32) -> (i32, i32, i32) {
    %c0_i32 = arith.constant 0 : i32
    %c0_i32_0 = arith.constant 0 : i32
    %c0_i32_1 = arith.constant 0 : i32
    return %c0_i32, %arg0, %c0_i32_0 : i32, i32, i32
  }
  func.func @transform_1(%arg0: i32) -> (i32, i32) {
    %c0_i32 = arith.constant 0 : i32
    %c0_i32_0 = arith.constant 0 : i32
    return %arg0, %c0_i32 : i32, i32
  }
  func.func @transform_2(%arg0: i32) -> (i32, i32) {
    %c0_i32 = arith.constant 0 : i32
    %c0_i32_0 = arith.constant 0 : i32
    return %arg0, %c0_i32 : i32, i32
  }
  func.func @transform_3(%arg0: i32) -> (i32, i32) {
    %c0_i32 = arith.constant 0 : i32
    %c0_i32_0 = arith.constant 0 : i32
    %c0_i32_1 = arith.constant 0 : i32
    return %c0_i32, %c0_i32_0 : i32, i32
  }
  func.func @transform_4(%arg0: i32) -> (i32, i32, i32) {
    %c0_i32 = arith.constant 0 : i32
    %c0_i32_0 = arith.constant 0 : i32
    %c0_i32_1 = arith.constant 0 : i32
    %c0_i32_2 = arith.constant 0 : i32
    return %c0_i32, %c0_i32_0, %c0_i32_1 : i32, i32, i32
  }
  func.func @transform_5(%arg0: i32) -> (i32, i32) {
    %c0_i32 = arith.constant 0 : i32
    %c0_i32_0 = arith.constant 0 : i32
    %c0_i32_1 = arith.constant 0 : i32
    return %c0_i32, %c0_i32_0 : i32, i32
  }
  func.func @transform_6(%arg0: i32) -> (i32, i32) {
    %c0_i32 = arith.constant 0 : i32
    %c0_i32_0 = arith.constant 0 : i32
    %c0_i32_1 = arith.constant 0 : i32
    return %c0_i32, %c0_i32_0 : i32, i32
  }
  func.func @transform_7(%arg0: i32) -> (i32, i32) {
    %c0_i32 = arith.constant 0 : i32
    %c0_i32_0 = arith.constant 0 : i32
    return %arg0, %c0_i32 : i32, i32
  }
}

</mosaic_0001>

<llo_original>
// kernel: tpu_custom_call.1
$region0: #{tpu_custom_call.1}
  #allocation0 [shape = 'u32[]', space=smem, size = 0x4, offset = 0x4, fixed_abs, tag = 'smem constant byte address 0x4 - core index']
  #allocation1 [shape = 'u32[72,128]{1,0:T(1,128)}', space=vmem, size = 0x9000, scoped, tag = 'internal scratch']
  %s0 = inlined_call_operand.vmem [shape: s32[3,16,4], index: 0, kind: input, shape index: {}]
  %s1 = inlined_call_operand.vmem [shape: s32[16,3], index: 1, kind: input, shape index: {}]
  %s2 = inlined_call_operand.vmem [shape: f32[16,32], index: 2, kind: input, shape index: {}]
  %s3 = inlined_call_operand.hbm [shape: f32[32,128], index: 3, kind: input, shape index: {}]
  %s4 = inlined_call_operand.vmem [shape: f32[3,16,128], index: 4, kind: input, shape index: {}]
  %s5 = inlined_call_operand.vmem [shape: f32[3,128], index: 5, kind: input, shape index: {}]
  %s6 = inlined_call_operand.vmem [shape: f32[1,128], index: 6, kind: input, shape index: {}]
  %s7 = inlined_call_operand.hbm [shape: f32[16,128], index: 7, kind: output, shape index: {}]
  %s8 = sld [smem:[#allocation0]]
  $region103: #{tpu_custom_call.1} parent=0
    _
  %s10 = ssub.s32 1, %s8
  %s11 = scalar_select 0, %s10, %s8
  $region1: #{tpu_custom_call.1} parent=0
    #allocation2 [shape = 'u8[24576]{0}', space=vmem, size = 0x6000, scoped, tag = 'input window, operand 0']
    #allocation3 [shape = 'u8[16384]{0}', space=vmem, size = 0x4000, scoped, tag = 'input window, operand 3, single buffered']
    #allocation4 [shape = 's32[2]{0}', space=sflag, size = 0x8, scoped, tag = 'scoped memory for tpu_custom_call.1']
    #allocation5 [shape = 's32[2]{0}', space=sflag, size = 0x8, scoped, tag = 'scoped memory for tpu_custom_call.1']
    #allocation6 [shape = 'u8[8192]{0}', space=vmem, size = 0x2000, scoped, tag = 'output window, operand 0']
    %12 = vsyncpa [#allocation4], 0
    %13 = vsyncpa [#allocation5], 0
    %s14 = scalar_lea.sflag [#allocation5], 1
    %15 = vsyncpa %s14, 0
    loop: start=0, step=1, limit=4
    $region2: #{tpu_custom_call.1} parent=1 // loop_pre_header
      _
    $region3: #{tpu_custom_call.1} parent=1 // loop_header
      %s17 = sphi 0, %s21
      %p18 = scmp.ge.s32.totalorder %s17, 4
      %s27 = sphi 0, %s29
      %s30 = sphi 0, %s27
      %s31 = sphi 0, %s30
      %s47 = sphi 0, %s31
      %s53 = sphi 0, %s55
      %s56 = sphi 0, %s53
      %s57 = sphi 0, %s56
      %s73 = sphi 0, %s57
      %s79 = sphi 0, %s81
      %s82 = sphi 0, %s79
      %s83 = sphi 0, %s82
      %s99 = sphi 0, %s83
      %s103 = sphi 0, %s103
      %s105 = sphi 0, %s103
      %s106 = sphi 0, %s105
      %s120 = sphi 0, %s106
      %s124 = sphi 0, %s124
      %s126 = sphi 0, %s124
      %s127 = sphi 0, %s126
      %s141 = sphi 0, %s127
      %s145 = sphi 0, %s145
      %s147 = sphi 0, %s145
      %s148 = sphi 0, %s147
      %s162 = sphi 0, %s148
      %s166 = sphi 0, %s166
      %s168 = sphi 0, %s166
      %s169 = sphi 0, %s168
      %s183 = sphi 0, %s169
      %s189 = sphi 0, %s191
      %s192 = sphi 0, %s189
      %s193 = sphi 0, %s192
      %s209 = sphi 0, %s193
    $region4: #{tpu_custom_call.1} parent=1 // loop_header_branch
      %20 = sbr.rel (%p18) target = $region8
    $region5: #{tpu_custom_call.1} parent=1 // loop_body
      %s22 = ssub.s32 %s17, 1
      %s23 = ssub.s32 %s17, 2
      %s24 = sadd.s32 %s17, 1
      %s25 = ssub.s32 %s17, %s24
      %p26 = scmp.eq.s32.totalorder %s25, 0
      %s28 = sadd.s32 %s27, 1
      %s29 = scalar_select %p26, %s27, %s28
      %p32 = pneg %p26
      %p33 = scmp.eq.s32.totalorder %s17, 1
      %p34 = por %p32, %p33
      %p35 = scmp.ne.s32.totalorder %s27, %s30
      %p36 = scmp.eq.s32.totalorder %s17, 0
      %p37 = por %p35, %p36
      %p38 = scmp.ne.s32.totalorder %s27, %s30
      %p39 = scmp.eq.s32.totalorder %s22, 1
      %p40 = por %p38, %p39
      %p41 = scmp.ne.s32.totalorder %s30, %s31
      %p42 = scmp.eq.s32.totalorder %s22, 0
      %p43 = por %p41, %p42
      %p44 = scmp.ne.s32.totalorder %s30, %s31
      %p45 = scmp.eq.s32.totalorder %s23, 1
      %p46 = por %p44, %p45
      %p48 = scmp.ne.s32.totalorder %s31, %s47
      %p49 = scmp.eq.s32.totalorder %s23, 0
      %p50 = por %p48, %p49
      %s51 = ssub.s32 %s17, %s24
      %p52 = scmp.eq.s32.totalorder %s51, 0
      %s54 = sadd.s32 %s53, 1
      %s55 = scalar_select %p52, %s53, %s54
      %p58 = pneg %p52
      %p59 = scmp.eq.s32.totalorder %s17, 1
      %p60 = por %p58, %p59
      %p61 = scmp.ne.s32.totalorder %s53, %s56
      %p62 = scmp.eq.s32.totalorder %s17, 0
      %p63 = por %p61, %p62
      %p64 = scmp.ne.s32.totalorder %s53, %s56
      %p65 = scmp.eq.s32.totalorder %s22, 1
      %p66 = por %p64, %p65
      %p67 = scmp.ne.s32.totalorder %s56, %s57
      %p68 = scmp.eq.s32.totalorder %s22, 0
      %p69 = por %p67, %p68
      %p70 = scmp.ne.s32.totalorder %s56, %s57
      %p71 = scmp.eq.s32.totalorder %s23, 1
      %p72 = por %p70, %p71
      %p74 = scmp.ne.s32.totalorder %s57, %s73
      %p75 = scmp.eq.s32.totalorder %s23, 0
      %p76 = por %p74, %p75
      %s77 = ssub.s32 %s17, %s24
      %p78 = scmp.eq.s32.totalorder %s77, 0
      %s80 = sadd.s32 %s79, 1
      %s81 = scalar_select %p78, %s79, %s80
      %p84 = pneg %p78
      %p85 = scmp.eq.s32.totalorder %s17, 1
      %p86 = por %p84, %p85
      %p87 = scmp.ne.s32.totalorder %s79, %s82
      %p88 = scmp.eq.s32.totalorder %s17, 0
      %p89 = por %p87, %p88
      %p90 = scmp.ne.s32.totalorder %s79, %s82
      %p91 = scmp.eq.s32.totalorder %s22, 1
      %p92 = por %p90, %p91
      %p93 = scmp.ne.s32.totalorder %s82, %s83
      %p94 = scmp.eq.s32.totalorder %s22, 0
      %p95 = por %p93, %p94
      %p96 = scmp.ne.s32.totalorder %s82, %s83
      %p97 = scmp.eq.s32.totalorder %s23, 1
      %p98 = por %p96, %p97
      %p100 = scmp.ne.s32.totalorder %s83, %s99
      %p101 = scmp.eq.s32.totalorder %s23, 0
      %p102 = por %p100, %p101
      %s104 = sadd.s32 %s103, 1
      %p107 = scmp.eq.s32.totalorder %s17, 1
      %p108 = scmp.ne.s32.totalorder %s103, %s105
      %p109 = scmp.eq.s32.totalorder %s17, 0
      %p110 = por %p108, %p109
      %p111 = scmp.ne.s32.totalorder %s103, %s105
      %p112 = scmp.eq.s32.totalorder %s22, 1
      %p113 = por %p111, %p112
      %p114 = scmp.ne.s32.totalorder %s105, %s106
      %p115 = scmp.eq.s32.totalorder %s22, 0
      %p116 = por %p114, %p115
      %p117 = scmp.ne.s32.totalorder %s105, %s106
      %p118 = scmp.eq.s32.totalorder %s23, 1
      %p119 = por %p117, %p118
      %p121 = scmp.ne.s32.totalorder %s106, %s120
      %p122 = scmp.eq.s32.totalorder %s23, 0
      %p123 = por %p121, %p122
      %s125 = sadd.s32 %s124, 1
      %p128 = scmp.eq.s32.totalorder %s17, 1
      %p129 = scmp.ne.s32.totalorder %s124, %s126
      %p130 = scmp.eq.s32.totalorder %s17, 0
      %p131 = por %p129, %p130
      %p132 = scmp.ne.s32.totalorder %s124, %s126
      %p133 = scmp.eq.s32.totalorder %s22, 1
      %p134 = por %p132, %p133
      %p135 = scmp.ne.s32.totalorder %s126, %s127
      %p136 = scmp.eq.s32.totalorder %s22, 0
      %p137 = por %p135, %p136
      %p138 = scmp.ne.s32.totalorder %s126, %s127
      %p139 = scmp.eq.s32.totalorder %s23, 1
      %p140 = por %p138, %p139
      %p142 = scmp.ne.s32.totalorder %s127, %s141
      %p143 = scmp.eq.s32.totalorder %s23, 0
      %p144 = por %p142, %p143
      %s146 = sadd.s32 %s145, 1
      %p149 = scmp.eq.s32.totalorder %s17, 1
      %p150 = scmp.ne.s32.totalorder %s145, %s147
      %p151 = scmp.eq.s32.totalorder %s17, 0
      %p152 = por %p150, %p151
      %p153 = scmp.ne.s32.totalorder %s145, %s147
      %p154 = scmp.eq.s32.totalorder %s22, 1
      %p155 = por %p153, %p154
      %p156 = scmp.ne.s32.totalorder %s147, %s148
      %p157 = scmp.eq.s32.totalorder %s22, 0
      %p158 = por %p156, %p157
      %p159 = scmp.ne.s32.totalorder %s147, %s148
      %p160 = scmp.eq.s32.totalorder %s23, 1
      %p161 = por %p159, %p160
      %p163 = scmp.ne.s32.totalorder %s148, %s162
      %p164 = scmp.eq.s32.totalorder %s23, 0
      %p165 = por %p163, %p164
      %s167 = sadd.s32 %s166, 1
      %p170 = scmp.eq.s32.totalorder %s17, 1
      %p171 = scmp.ne.s32.totalorder %s166, %s168
      %p172 = scmp.eq.s32.totalorder %s17, 0
      %p173 = por %p171, %p172
      %p174 = scmp.ne.s32.totalorder %s166, %s168
      %p175 = scmp.eq.s32.totalorder %s22, 1
      %p176 = por %p174, %p175
      %p177 = scmp.ne.s32.totalorder %s168, %s169
      %p178 = scmp.eq.s32.totalorder %s22, 0
      %p179 = por %p177, %p178
      %p180 = scmp.ne.s32.totalorder %s168, %s169
      %p181 = scmp.eq.s32.totalorder %s23, 1
      %p182 = por %p180, %p181
      %p184 = scmp.ne.s32.totalorder %s169, %s183
      %p185 = scmp.eq.s32.totalorder %s23, 0
      %p186 = por %p184, %p185
      %s187 = ssub.s32 %s17, %s24
      %p188 = scmp.eq.s32.totalorder %s187, 0
      %s190 = sadd.s32 %s189, 1
      %s191 = scalar_select %p188, %s189, %s190
      %p194 = pneg %p188
      %p195 = scmp.eq.s32.totalorder %s17, 1
      %p196 = por %p194, %p195
      %p197 = scmp.ne.s32.totalorder %s189, %s192
      %p198 = scmp.eq.s32.totalorder %s17, 0
      %p199 = por %p197, %p198
      %p200 = scmp.ne.s32.totalorder %s189, %s192
      %p201 = scmp.eq.s32.totalorder %s22, 1
      %p202 = por %p200, %p201
      %p203 = scmp.ne.s32.totalorder %s192, %s193
      %p204 = scmp.eq.s32.totalorder %s22, 0
      %p205 = por %p203, %p204
      %p206 = scmp.ne.s32.totalorder %s192, %s193
      %p207 = scmp.eq.s32.totalorder %s23, 1
      %p208 = por %p206, %p207
      %p210 = scmp.ne.s32.totalorder %s193, %s209
      %p211 = scmp.eq.s32.totalorder %s23, 0
      %p212 = por %p210, %p211
      %p213 = scmp.le.s32.totalorder 1, %s17
      %p214 = scmp.lt.s32.totalorder %s17, 3
      %p215 = pnand %p213, %p214
      %p216 = pneg %p215
      // Predicated region
      $region9: #{tpu_custom_call.1} parent=5 // pred_check
        _
      $region10: #{tpu_custom_call.1} parent=5 // pred_check_branch
        %218 = sbr.rel (%p215) target = $region12
      $region11: #{tpu_custom_call.1} parent=5 // pred_region
        %s219 = ssub.s32 %s17, 1
        // Predicated region
        $region13: #{tpu_custom_call.1} parent=11 // pred_check
          %p220 = pneg %p116
        $region14: #{tpu_custom_call.1} parent=11 // pred_check_branch
          %222 = sbr.rel (%p220) target = $region16
        $region15: #{tpu_custom_call.1} parent=11 // pred_region
          %224 = vsyncadd [#allocation4], 0
          %s225 = sshll.u32 %s3, 4
          %s226 = int_to_ptr.hbm [resolvable:$true] %s225
          %s227 = sshll.u32 [#allocation3], 4
          %s228 = int_to_ptr.vmem [resolvable:$true] %s227
          %233 = dma.hbm_to_vmem [thread:$0]  %s226, 512, %s228, [#allocation4], 128, 128, 8
        $region16: #{tpu_custom_call.1} parent=11 // pred_fallthru
          _
        // Predicated region
        $region17: #{tpu_custom_call.1} parent=11 // pred_check
          %p234 = pneg %p137
        $region18: #{tpu_custom_call.1} parent=11 // pred_check_branch
          %236 = sbr.rel (%p234) target = $region20
        $region19: #{tpu_custom_call.1} parent=11 // pred_region
          _
        $region20: #{tpu_custom_call.1} parent=11 // pred_fallthru
          _
        // Predicated region
        $region21: #{tpu_custom_call.1} parent=11 // pred_check
          %p237 = pneg %p158
        $region22: #{tpu_custom_call.1} parent=11 // pred_check_branch
          %239 = sbr.rel (%p237) target = $region24
        $region23: #{tpu_custom_call.1} parent=11 // pred_region
          _
        $region24: #{tpu_custom_call.1} parent=11 // pred_fallthru
          _
        // Predicated region
        $region25: #{tpu_custom_call.1} parent=11 // pred_check
          %p240 = pneg %p179
        $region26: #{tpu_custom_call.1} parent=11 // pred_check_branch
          %242 = sbr.rel (%p240) target = $region28
        $region27: #{tpu_custom_call.1} parent=11 // pred_region
          _
        $region28: #{tpu_custom_call.1} parent=11 // pred_fallthru
          _
      $region12: #{tpu_custom_call.1} parent=5 // pred_fallthru
        _
      %p243 = scmp.lt.s32.totalorder %s17, 2
      // Predicated region
      $region29: #{tpu_custom_call.1} parent=5 // pred_check
        %p244 = pneg %p243
      $region30: #{tpu_custom_call.1} parent=5 // pred_check_branch
        %246 = sbr.rel (%p244) target = $region32
      $region31: #{tpu_custom_call.1} parent=5 // pred_region
        // Predicated region
        $region33: #{tpu_custom_call.1} parent=31 // pred_check
          %p247 = pneg %p37
        $region34: #{tpu_custom_call.1} parent=31 // pred_check_branch
          %249 = sbr.rel (%p247) target = $region36
        $region35: #{tpu_custom_call.1} parent=31 // pred_region
          %s250 = sand.u32 %s27, 1
          %s251 = sand.u32 %s27, 1
          %s252 = smul.addr %s251, 24
          %s253 = scalar_lea.vmem [#allocation2], %s252
          %s254 = smul.addr %s17, 8
          %s255 = scalar_lea.vmem %s0, %s254
          // Predicated region
          $region37: #{tpu_custom_call.1} parent=35 // pred_check
            _
          $region38: #{tpu_custom_call.1} parent=35 // pred_check_branch
            %257 = sbr.rel (0) target = $region40
          $region39: #{tpu_custom_call.1} parent=35 // pred_region
            // Predicated region
            $region41: #{tpu_custom_call.1} parent=39 // pred_check
              _
            $region42: #{tpu_custom_call.1} parent=39 // pred_check_branch
              %259 = sbr.rel (0) target = $region44
            $region43: #{tpu_custom_call.1} parent=39 // pred_region
              // Predicated region
              $region56: #{tpu_custom_call.1} parent=43 // pred_check
                _
              $region57: #{tpu_custom_call.1} parent=43 // pred_check_branch
                %279 = sbr.rel (0) target = $region59
              $region58: #{tpu_custom_call.1} parent=43 // pred_region
                loop: start=0, step=1, limit=1
                $region60: #{tpu_custom_call.1} parent=58 // loop_pre_header
                  _
                $region61: #{tpu_custom_call.1} parent=58 // loop_header
                  %s281 = sphi 0, %s285
                  %p282 = scmp.ge.s32.totalorder %s281, 1
                  %s286 = sphi %s255, %s255
                  %s287 = sphi %s253, %s253
                $region62: #{tpu_custom_call.1} parent=58 // loop_header_branch
                  %284 = sbr.rel (%p282) target = $region66
                $region63: #{tpu_custom_call.1} parent=58 // loop_body
                  %v288 = vld [vmem:[%s286] sm:$0xff]
                  %289 = vst [vmem:[%s287] sm:$0xff] %v288
                  %v290 = vld [vmem:[%s286 + $0x10] sm:$0xff]
                  %291 = vst [vmem:[%s287 + $0x8] sm:$0xff] %v290
                  %v292 = vld [vmem:[%s286 + $0x20] sm:$0xff]
                  %293 = vst [vmem:[%s287 + $0x10] sm:$0xff] %v292
                $region64: #{tpu_custom_call.1} parent=58 // loop_footer
                  %s285 = sadd.s32 1, %s281
                $region65: #{tpu_custom_call.1} parent=58 // loop_footer_branch
                  %280 = sbr.rel target = $region61
                $region66: #{tpu_custom_call.1} parent=58 // loop_exit
                  _
              $region59: #{tpu_custom_call.1} parent=43 // pred_fallthru
                _
              // Predicated region
              $region67: #{tpu_custom_call.1} parent=43 // pred_check
                _
              $region68: #{tpu_custom_call.1} parent=43 // pred_check_branch
                %295 = sbr.rel target = $region70
              $region69: #{tpu_custom_call.1} parent=43 // pred_region
                _
              $region70: #{tpu_custom_call.1} parent=43 // pred_fallthru
                _
            $region44: #{tpu_custom_call.1} parent=39 // pred_fallthru
              _
            // Predicated region
            $region45: #{tpu_custom_call.1} parent=39 // pred_check
              _
            $region46: #{tpu_custom_call.1} parent=39 // pred_check_branch
              %261 = sbr.rel target = $region48
            $region47: #{tpu_custom_call.1} parent=39 // pred_region
              %s263 = ssub.s32 256, 1
              loop: start=0, step=1, limit=1
              $region49: #{tpu_custom_call.1} parent=47 // loop_pre_header
                _
              $region50: #{tpu_custom_call.1} parent=47 // loop_header
                %s265 = sphi 0, %s269
                %p266 = scmp.ge.s32.totalorder %s265, 1
                %s270 = sphi %s255, %s255
                %s271 = sphi %s253, %s253
              $region51: #{tpu_custom_call.1} parent=47 // loop_header_branch
                %268 = sbr.rel (%p266) target = $region55
              $region52: #{tpu_custom_call.1} parent=47 // loop_body
                %v272 = vld [vmem:[%s270] sm:%s263]
                %273 = vst [vmem:[%s271] sm:%s263] %v272
                %v274 = vld [vmem:[%s270 + $0x10] sm:%s263]
                %275 = vst [vmem:[%s271 + $0x8] sm:%s263] %v274
                %v276 = vld [vmem:[%s270 + $0x20] sm:%s263]
                %277 = vst [vmem:[%s271 + $0x10] sm:%s263] %v276
              $region53: #{tpu_custom_call.1} parent=47 // loop_footer
                %s269 = sadd.s32 1, %s265
              $region54: #{tpu_custom_call.1} parent=47 // loop_footer_branch
                %264 = sbr.rel target = $region50
              $region55: #{tpu_custom_call.1} parent=47 // loop_exit
                _
            $region48: #{tpu_custom_call.1} parent=39 // pred_fallthru
              _
          $region40: #{tpu_custom_call.1} parent=35 // pred_fallthru
            _
          %296 = vnop
        $region36: #{tpu_custom_call.1} parent=31 // pred_fallthru
          _
        // Predicated region
        $region71: #{tpu_custom_call.1} parent=31 // pred_check
          %p297 = pneg %p63
        $region72: #{tpu_custom_call.1} parent=31 // pred_check_branch
          %299 = sbr.rel (%p297) target = $region74
        $region73: #{tpu_custom_call.1} parent=31 // pred_region
          %p300 = scmp.lt.s32.totalorder %s17, 1
          %s301 = scalar_select %p300, %s17, 1
          %s302 = smul.addr %s301, 8
          %s303 = scalar_lea.vmem %s1, %s302
        $region74: #{tpu_custom_call.1} parent=31 // pred_fallthru
          _
        // Predicated region
        $region75: #{tpu_custom_call.1} parent=31 // pred_check
          %p304 = pneg %p89
        $region76: #{tpu_custom_call.1} parent=31 // pred_check_branch
          %306 = sbr.rel (%p304) target = $region78
        $region77: #{tpu_custom_call.1} parent=31 // pred_region
          %p307 = scmp.lt.s32.totalorder %s17, 1
          %s308 = scalar_select %p307, %s17, 1
          %s309 = smul.addr %s308, 8
          %s310 = scalar_lea.vmem %s2, %s309
        $region78: #{tpu_custom_call.1} parent=31 // pred_fallthru
          _
      $region32: #{tpu_custom_call.1} parent=5 // pred_fallthru
        _
      %p311 = scmp.le.s32.totalorder 1, %s17
      %p312 = scmp.lt.s32.totalorder %s17, 3
      %p313 = pnand %p311, %p312
      %p314 = pneg %p313
      // Predicated region
      $region79: #{tpu_custom_call.1} parent=5 // pred_check
        _
      $region80: #{tpu_custom_call.1} parent=5 // pred_check_branch
        %316 = sbr.rel (%p313) target = $region82
      $region81: #{tpu_custom_call.1} parent=5 // pred_region
        %s317 = ssub.s32 %s17, 1
        %s318 = sand.u32 %s30, 1
        %s319 = sand.u32 %s30, 1
        %s320 = smul.addr %s319, 24
        %s321 = scalar_lea.vmem [#allocation2], %s320
        // Predicated region
        $region83: #{tpu_custom_call.1} parent=81 // pred_check
          %p322 = pneg %p43
        $region84: #{tpu_custom_call.1} parent=81 // pred_check_branch
          %324 = sbr.rel (%p322) target = $region86
        $region85: #{tpu_custom_call.1} parent=81 // pred_region
          _
        $region86: #{tpu_custom_call.1} parent=81 // pred_fallthru
          _
        // Predicated region
        $region87: #{tpu_custom_call.1} parent=81 // pred_check
          %p325 = pneg %p116
        $region88: #{tpu_custom_call.1} parent=81 // pred_check_branch
          %327 = sbr.rel (%p325) target = $region90
        $region89: #{tpu_custom_call.1} parent=81 // pred_region
          %329 = dma.done [#allocation4], 512
        $region90: #{tpu_custom_call.1} parent=81 // pred_fallthru
          _
        %s330 = sand.u32 %s30, 1
        %s331 = sand.u32 %s30, 1
        %s332 = smul.addr %s331, 24
        %s333 = scalar_lea.vmem [#allocation2], %s332
        %p334 = pneg %p43
        %p335 = pneg %p40
        %p336 = scmp.lt.s32.totalorder %s22, 1
        %s337 = scalar_select %p336, %s22, 1
        %s338 = smul.addr %s337, 8
        %s339 = scalar_lea.vmem %s1, %s338
        %p340 = pneg %p69
        %p341 = pneg %p66
        %p342 = scmp.lt.s32.totalorder %s22, 1
        %s343 = scalar_select %p342, %s22, 1
        %s344 = smul.addr %s343, 8
        %s345 = scalar_lea.vmem %s2, %s344
        %p346 = pneg %p95
        %p347 = pneg %p92
        %p348 = pneg %p116
        %p349 = pneg %p113
        %p350 = pneg %p137
        %p351 = pneg %p134
        %p352 = pneg %p158
        %p353 = pneg %p155
        %p354 = pneg %p179
        %p355 = pneg %p176
        %p356 = pneg %p205
        %p357 = pneg %p202
        %s358 = sand.u32 %s192, 1
        %s359 = scalar_lea.sflag [#allocation5], %s358
        %s360 = sand.u32 %s192, 1
        %s361 = smul.addr %s360, 8
        %s362 = scalar_lea.vmem [#allocation6], %s361
        %p363 = scmp.lt.s32.totalorder %s22, 1
        %s364 = scalar_select %p363, %s22, 1
        %s365 = smul.addr %s364, 8
        %s366 = scalar_lea.vmem %s1, %s365
        %p367 = scmp.lt.s32.totalorder %s22, 1
        %s368 = scalar_select %p367, %s22, 1
        %s369 = smul.addr %s368, 8
        %s370 = scalar_lea.vmem %s2, %s369
        %v371 = vld [vmem:[%s370] sm:$0xff]
        %v372 = vld [vmem:[#allocation3] sm:$0xff]
        %v373 = vld [vmem:[#allocation3 + $0x8] sm:$0xff]
        %v374 = vld [vmem:[#allocation3 + $0x10] sm:$0xff]
        %v375 = vld [vmem:[#allocation3 + $0x18] sm:$0xff]
        %v376 = vld [vmem:[%s6] sm:$0x1]
        %v378 = vperm.slane %v376, 0
        %vm380 = vcmask 261120
        %v382 = vsel %vm380, %v371, 0
        %384 = vmatpush.msra.mxu0 0.0
        %385 = vmatpush.msra.mxu0 0.0
        %386 = vmatpush.msra.mxu0 0.0
        %387 = vmatpush.msra.mxu0 0.0
        %388 = vmatpush.msra.mxu0 0.0
        %389 = vmatpush.msra.mxu0 0.0
        %390 = vmatpush.msra.mxu0 0.0
        %391 = vmatpush.msra.mxu0 0.0
        %392 = vmatpush.msra.mxu0 0.0
        %393 = vmatpush.msra.mxu0 0.0
        %394 = vmatpush.msra.mxu0 0.0
        %395 = vmatpush.msra.mxu0 0.0
        %396 = vmatpush.msra.mxu0 %v375
        %397 = vmatpush.msra.mxu0 %v374
        %398 = vmatpush.msra.mxu0 %v373
        %399 = vmatpush.msra.mxu0 %v372
        %400 = vmatmul.f32.gmra.mxu0 %v382
        %v401 = vpop.f32.mrf.mxu0
        %v402 = vadd.f32 %v378, %v401
        %403 = vdwg.mxu0
        %v404 = vlaneseq
        %v405 = vand.u32 %v404, 127
        %v406 = vld [vmem:[%s321] sm:$0xff]
        %v407 = vld [vmem:[%s366] sm:$0xff]
        %408 = vset.pattern.permute.xlu0 0
        %409 = vperm.xlu0 %408, %v406
        %v410 = vpop.permute.xlu0 %409
        %vm411 = vcmp.eq.s32.totalorder %v410, %v405
        %vm412 = vcmp.gt.s32.totalorder %v407, 0
        %v413 = vsel %vm412, 1, 0
        %414 = vset.pattern.permute.xlu0 0
        %415 = vperm.xlu0 %414, %v413
        %v416 = vpop.permute.xlu0 %415
        %vm417 = vcmp.eq.s32.totalorder %v416, 1
        %vm418 = vmand %vm411, %vm417
        %v419 = vsel %vm418, 1, 0
        %v420 = vcvt.s32.f32 %v419
        %v421 = vadd.f32 %v420, 0.0
        %422 = vset.pattern.permute.xlu0 1
        %423 = vperm.xlu0 %422, %v406
        %v424 = vpop.permute.xlu0 %423
        %vm425 = vcmp.eq.s32.totalorder %v424, %v405
        %vm426 = vcmp.gt.s32.totalorder %v407, 1
        %v427 = vsel %vm426, 1, 0
        %428 = vset.pattern.permute.xlu0 0
        %429 = vperm.xlu0 %428, %v427
        %v430 = vpop.permute.xlu0 %429
        %vm431 = vcmp.eq.s32.totalorder %v430, 1
        %vm432 = vmand %vm425, %vm431
        %v433 = vsel %vm432, 1, 0
        %v434 = vcvt.s32.f32 %v433
        %v435 = vadd.f32 %v421, %v434
        %436 = vset.pattern.permute.xlu0 2
        %437 = vperm.xlu0 %436, %v406
        %v438 = vpop.permute.xlu0 %437
        %vm439 = vcmp.eq.s32.totalorder %v438, %v405
        %vm440 = vcmp.gt.s32.totalorder %v407, 2
        %v441 = vsel %vm440, 1, 0
        %442 = vset.pattern.permute.xlu0 0
        %443 = vperm.xlu0 %442, %v441
        %v444 = vpop.permute.xlu0 %443
        %vm445 = vcmp.eq.s32.totalorder %v444, 1
        %vm446 = vmand %vm439, %vm445
        %v447 = vsel %vm446, 1, 0
        %v448 = vcvt.s32.f32 %v447
        %v449 = vadd.f32 %v435, %v448
        %450 = vset.pattern.permute.xlu0 3
        %451 = vperm.xlu0 %450, %v406
        %v452 = vpop.permute.xlu0 %451
        %vm453 = vcmp.eq.s32.totalorder %v452, %v405
        %vm454 = vcmp.gt.s32.totalorder %v407, 3
        %v455 = vsel %vm454, 1, 0
        %456 = vset.pattern.permute.xlu0 0
        %457 = vperm.xlu0 %456, %v455
        %v458 = vpop.permute.xlu0 %457
        %vm459 = vcmp.eq.s32.totalorder %v458, 1
        %vm460 = vmand %vm453, %vm459
        %v461 = vsel %vm460, 1, 0
        %v462 = vcvt.s32.f32 %v461
        %v463 = vadd.f32 %v449, %v462
        %v464 = vcvt.s32.f32 %v407
        %v465 = vmax.f32 %v464, 1.0
        %v466 = vrcp.pop %v465
        %468 = vset.pattern.permute.xlu0 0
        %469 = vperm.xlu0 %468, %v466
        %v470 = vpop.permute.xlu0 %469
        %v472 = vmul.f32 %v463, %v470
        %v473 = vld [vmem:[%s4] sm:$0xff]
        %v474 = vld [vmem:[%s4 + $0x8] sm:$0xff]
        %vm475 = vcmask 130048
        %v477 = vsel %vm475, %v472, 0
        %479 = vmatpush.msra.mxu0 0.0
        %480 = vmatpush.msra.mxu0 0.0
        %481 = vmatpush.msra.mxu0 0.0
        %482 = vmatpush.msra.mxu0 0.0
        %483 = vmatpush.msra.mxu0 0.0
        %484 = vmatpush.msra.mxu0 0.0
        %485 = vmatpush.msra.mxu0 0.0
        %486 = vmatpush.msra.mxu0 0.0
        %487 = vmatpush.msra.mxu0 0.0
        %488 = vmatpush.msra.mxu0 0.0
        %489 = vmatpush.msra.mxu0 0.0
        %490 = vmatpush.msra.mxu0 0.0
        %491 = vmatpush.msra.mxu0 0.0
        %492 = vmatpush.msra.mxu0 0.0
        %493 = vmatpush.msra.mxu0 %v474
        %494 = vmatpush.msra.mxu0 %v473
        %495 = vmatmul.f32.gmra.mxu0 %v477
        %v496 = vpop.f32.mrf.mxu0
        %v497 = vadd.f32 0.0, %v496
        %498 = vdwg.mxu0
        %v499 = vadd.f32 %v402, %v497
        %vm500 = vcmp.eq.s32.totalorder %v407, 0
        %v501 = vsel %vm500, 1, 0
        %v502 = vcvt.s32.f32 %v501
        %v503 = vld [vmem:[%s5] sm:$0x1]
        %505 = vset.pattern.permute.xlu0 0
        %506 = vperm.xlu0 %505, %v502
        %v507 = vpop.permute.xlu0 %506
        %v509 = vperm.slane %v503, 0
        %v510 = vmul.f32 %v507, %v509
        %v511 = vadd.f32 %v499, %v510
        %s512 = scalar_lea.vmem %s321, 8 [#allocation2]
        %v513 = vld [vmem:[%s512] sm:$0xff]
        %514 = vset.pattern.permute.xlu0 0
        %515 = vperm.xlu0 %514, %v513
        %v516 = vpop.permute.xlu0 %515
        %vm517 = vcmp.eq.s32.totalorder %v516, %v405
        %518 = vset.pattern.permute.xlu0 1
        %519 = vperm.xlu0 %518, %v413
        %v520 = vpop.permute.xlu0 %519
        %vm521 = vcmp.eq.s32.totalorder %v520, 1
        %vm522 = vmand %vm517, %vm521
        %v523 = vsel %vm522, 1, 0
        %v524 = vcvt.s32.f32 %v523
        %v525 = vadd.f32 %v524, 0.0
        %526 = vset.pattern.permute.xlu0 1
        %527 = vperm.xlu0 %526, %v513
        %v528 = vpop.permute.xlu0 %527
        %vm529 = vcmp.eq.s32.totalorder %v528, %v405
        %530 = vset.pattern.permute.xlu0 1
        %531 = vperm.xlu0 %530, %v427
        %v532 = vpop.permute.xlu0 %531
        %vm533 = vcmp.eq.s32.totalorder %v532, 1
        %vm534 = vmand %vm529, %vm533
        %v535 = vsel %vm534, 1, 0
        %v536 = vcvt.s32.f32 %v535
        %v537 = vadd.f32 %v525, %v536
        %538 = vset.pattern.permute.xlu0 2
        %539 = vperm.xlu0 %538, %v513
        %v540 = vpop.permute.xlu0 %539
        %vm541 = vcmp.eq.s32.totalorder %v540, %v405
        %542 = vset.pattern.permute.xlu0 1
        %543 = vperm.xlu0 %542, %v441
        %v544 = vpop.permute.xlu0 %543
        %vm545 = vcmp.eq.s32.totalorder %v544, 1
        %vm546 = vmand %vm541, %vm545
        %v547 = vsel %vm546, 1, 0
        %v548 = vcvt.s32.f32 %v547
        %v549 = vadd.f32 %v537, %v548
        %550 = vset.pattern.permute.xlu0 3
        %551 = vperm.xlu0 %550, %v513
        %v552 = vpop.permute.xlu0 %551
        %vm553 = vcmp.eq.s32.totalorder %v552, %v405
        %554 = vset.pattern.permute.xlu0 1
        %555 = vperm.xlu0 %554, %v455
        %v556 = vpop.permute.xlu0 %555
        %vm557 = vcmp.eq.s32.totalorder %v556, 1
        %vm558 = vmand %vm553, %vm557
        %v559 = vsel %vm558, 1, 0
        %v560 = vcvt.s32.f32 %v559
        %v561 = vadd.f32 %v549, %v560
        %562 = vset.pattern.permute.xlu0 1
        %563 = vperm.xlu0 %562, %v466
        %v564 = vpop.permute.xlu0 %563
        %v566 = vmul.f32 %v561, %v564
        %s567 = scalar_lea.vmem %s4, 16
        %v568 = vld [vmem:[%s567] sm:$0xff]
        %v569 = vld [vmem:[%s567 + $0x8] sm:$0xff]
        %v571 = vsel %vm475, %v566, 0
        %573 = vmatpush.msra.mxu0 0.0
        %574 = vmatpush.msra.mxu0 0.0
        %575 = vmatpush.msra.mxu0 0.0
        %576 = vmatpush.msra.mxu0 0.0
        %577 = vmatpush.msra.mxu0 0.0
        %578 = vmatpush.msra.mxu0 0.0
        %579 = vmatpush.msra.mxu0 0.0
        %580 = vmatpush.msra.mxu0 0.0
        %581 = vmatpush.msra.mxu0 0.0
        %582 = vmatpush.msra.mxu0 0.0
        %583 = vmatpush.msra.mxu0 0.0
        %584 = vmatpush.msra.mxu0 0.0
        %585 = vmatpush.msra.mxu0 0.0
        %586 = vmatpush.msra.mxu0 0.0
        %587 = vmatpush.msra.mxu0 %v569
        %588 = vmatpush.msra.mxu0 %v568
        %589 = vmatmul.f32.gmra.mxu0 %v571
        %v590 = vpop.f32.mrf.mxu0
        %v591 = vadd.f32 0.0, %v590
        %592 = vdwg.mxu0
        %v593 = vadd.f32 %v511, %v591
        %v594 = vld [vmem:[%s5 + $0x1] sm:$0x1]
        %595 = vset.pattern.permute.xlu0 1
        %596 = vperm.xlu0 %595, %v502
        %v597 = vpop.permute.xlu0 %596
        %v599 = vperm.slane %v594, 0
        %v600 = vmul.f32 %v597, %v599
        %v601 = vadd.f32 %v593, %v600
        %s602 = scalar_lea.vmem %s321, 16 [#allocation2]
        %v603 = vld [vmem:[%s602] sm:$0xff]
        %604 = vset.pattern.permute.xlu0 0
        %605 = vperm.xlu0 %604, %v603
        %v606 = vpop.permute.xlu0 %605
        %vm607 = vcmp.eq.s32.totalorder %v606, %v405
        %608 = vset.pattern.permute.xlu0 2
        %609 = vperm.xlu0 %608, %v413
        %v610 = vpop.permute.xlu0 %609
        %vm611 = vcmp.eq.s32.totalorder %v610, 1
        %vm612 = vmand %vm607, %vm611
        %v613 = vsel %vm612, 1, 0
        %v614 = vcvt.s32.f32 %v613
        %v615 = vadd.f32 %v614, 0.0
        %616 = vset.pattern.permute.xlu0 1
        %617 = vperm.xlu0 %616, %v603
        %v618 = vpop.permute.xlu0 %617
        %vm619 = vcmp.eq.s32.totalorder %v618, %v405
        %620 = vset.pattern.permute.xlu0 2
        %621 = vperm.xlu0 %620, %v427
        %v622 = vpop.permute.xlu0 %621
        %vm623 = vcmp.eq.s32.totalorder %v622, 1
        %vm624 = vmand %vm619, %vm623
        %v625 = vsel %vm624, 1, 0
        %v626 = vcvt.s32.f32 %v625
        %v627 = vadd.f32 %v615, %v626
        %628 = vset.pattern.permute.xlu0 2
        %629 = vperm.xlu0 %628, %v603
        %v630 = vpop.permute.xlu0 %629
        %vm631 = vcmp.eq.s32.totalorder %v630, %v405
        %632 = vset.pattern.permute.xlu0 2
        %633 = vperm.xlu0 %632, %v441
        %v634 = vpop.permute.xlu0 %633
        %vm635 = vcmp.eq.s32.totalorder %v634, 1
        %vm636 = vmand %vm631, %vm635
        %v637 = vsel %vm636, 1, 0
        %v638 = vcvt.s32.f32 %v637
        %v639 = vadd.f32 %v627, %v638
        %640 = vset.pattern.permute.xlu0 3
        %641 = vperm.xlu0 %640, %v603
        %v642 = vpop.permute.xlu0 %641
        %vm643 = vcmp.eq.s32.totalorder %v642, %v405
        %644 = vset.pattern.permute.xlu0 2
        %645 = vperm.xlu0 %644, %v455
        %v646 = vpop.permute.xlu0 %645
        %vm647 = vcmp.eq.s32.totalorder %v646, 1
        %vm648 = vmand %vm643, %vm647
        %v649 = vsel %vm648, 1, 0
        %v650 = vcvt.s32.f32 %v649
        %v651 = vadd.f32 %v639, %v650
        %652 = vset.pattern.permute.xlu0 2
        %653 = vperm.xlu0 %652, %v466
        %v654 = vpop.permute.xlu0 %653
        %v656 = vmul.f32 %v651, %v654
        %s657 = scalar_lea.vmem %s4, 32
        %v658 = vld [vmem:[%s657] sm:$0xff]
        %v659 = vld [vmem:[%s657 + $0x8] sm:$0xff]
        %v661 = vsel %vm475, %v656, 0
        %663 = vmatpush.msra.mxu0 0.0
        %664 = vmatpush.msra.mxu0 0.0
        %665 = vmatpush.msra.mxu0 0.0
        %666 = vmatpush.msra.mxu0 0.0
        %667 = vmatpush.msra.mxu0 0.0
        %668 = vmatpush.msra.mxu0 0.0
        %669 = vmatpush.msra.mxu0 0.0
        %670 = vmatpush.msra.mxu0 0.0
        %671 = vmatpush.msra.mxu0 0.0
        %672 = vmatpush.msra.mxu0 0.0
        %673 = vmatpush.msra.mxu0 0.0
        %674 = vmatpush.msra.mxu0 0.0
        %675 = vmatpush.msra.mxu0 0.0
        %676 = vmatpush.msra.mxu0 0.0
        %677 = vmatpush.msra.mxu0 %v659
        %678 = vmatpush.msra.mxu0 %v658
        %679 = vmatmul.f32.gmra.mxu0 %v661
        %v680 = vpop.f32.mrf.mxu0
        %v681 = vadd.f32 0.0, %v680
        %682 = vdwg.mxu0
        %v683 = vadd.f32 %v601, %v681
        %v684 = vld [vmem:[%s5 + $0x2] sm:$0x1]
        %685 = vset.pattern.permute.xlu0 2
        %686 = vperm.xlu0 %685, %v502
        %v687 = vpop.permute.xlu0 %686
        %v689 = vperm.slane %v684, 0
        %v690 = vmul.f32 %v687, %v689
        %v691 = vadd.f32 %v683, %v690
        %692 = vst [vmem:[%s362] sm:$0xff] %v691
        %s693 = sand.u32 %s192, 1
        %s694 = scalar_lea.sflag [#allocation5], %s693
        %s695 = sand.u32 %s192, 1
        %s696 = smul.addr %s695, 8
        %s697 = scalar_lea.vmem [#allocation6], %s696
        // Predicated region
        $region91: #{tpu_custom_call.1} parent=81 // pred_check
          %p698 = pneg %p202
        $region92: #{tpu_custom_call.1} parent=81 // pred_check_branch
          %700 = sbr.rel (%p698) target = $region94
        $region93: #{tpu_custom_call.1} parent=81 // pred_region
          %702 = vsyncadd %s694, 0
          %s703 = smul.addr %s22, 8
          %s704 = scalar_lea.hbm %s7, %s703
          %s706 = sshll.u32 %s697, 4
          %s707 = int_to_ptr.vmem [resolvable:$true] %s706
          %s708 = sshll.u32 %s704, 4
          %s709 = int_to_ptr.hbm [resolvable:$true] %s708
          %711 = dma.vmem_to_hbm [thread:$0]  %s707, 128, %s709, %s694
        $region94: #{tpu_custom_call.1} parent=81 // pred_fallthru
          _
      $region82: #{tpu_custom_call.1} parent=5 // pred_fallthru
        _
      %p712 = scmp.le.s32.totalorder 2, %s17
      // Predicated region
      $region95: #{tpu_custom_call.1} parent=5 // pred_check
        %p713 = pneg %p712
      $region96: #{tpu_custom_call.1} parent=5 // pred_check_branch
        %715 = sbr.rel (%p713) target = $region98
      $region97: #{tpu_custom_call.1} parent=5 // pred_region
        %s716 = ssub.s32 %s17, 2
        // Predicated region
        $region99: #{tpu_custom_call.1} parent=97 // pred_check
          %p717 = pneg %p208
        $region100: #{tpu_custom_call.1} parent=97 // pred_check_branch
          %719 = sbr.rel (%p717) target = $region102
        $region101: #{tpu_custom_call.1} parent=97 // pred_region
          %s720 = sand.u32 %s193, 1
          %s721 = scalar_lea.sflag [#allocation5], %s720
          %s722 = sand.u32 %s193, 1
          %s723 = smul.addr %s722, 8
          %s724 = scalar_lea.vmem [#allocation6], %s723
          %726 = dma.done %s721, 128
        $region102: #{tpu_custom_call.1} parent=97 // pred_fallthru
          _
      $region98: #{tpu_custom_call.1} parent=5 // pred_fallthru
        _
    $region6: #{tpu_custom_call.1} parent=1 // loop_footer
      %s21 = sadd.s32 1, %s17
    $region7: #{tpu_custom_call.1} parent=1 // loop_footer_branch
      %16 = sbr.rel target = $region3
    $region8: #{tpu_custom_call.1} parent=1 // loop_exit
      _
    %727 = vsyncpa [#allocation4], 1
    %s728 = scalar_lea.sflag [#allocation4], 1
    %729 = vsyncpa %s728, 1
    %730 = vsyncpa [#allocation5], 1
    %s731 = scalar_lea.sflag [#allocation5], 1
    %732 = vsyncpa %s731, 1

</llo_original>
